<compile_context>
chip_gen: v5e
topology: v5e:2x2
jax: 0.10.0
libtpu: 0.0.40
codegen_flags: <defaults>
</compile_context>

<pallas_src>
import math

import numpy as np
import jax
import jax.numpy as jnp
from jax.experimental import pallas as pl
from jax.experimental.pallas import tpu as pltpu


# ---- compile-time constant folding of script_fn + TracedModule + ScriptModule
# w[i] = floor(sqrt(float32(i!)) / 5.0), computed in float32 to mirror torch.
# i! is exactly representable in float32 for i <= 12.
_FACTS_F32 = np.array([math.factorial(i) for i in range(13)], dtype=np.float32)
_W_TABLE = np.floor(np.sqrt(_FACTS_F32) / np.float32(5.0)).astype(np.float32)
# r[i] = w/2 if int(fmod(w, 2.0)) == 0 else -w   (w >= 0, integer-valued)
_R_TABLE = np.where(
    (_W_TABLE.astype(np.int64) % 2) == 0,
    _W_TABLE * np.float32(0.5),
    -_W_TABLE,
).astype(np.float32)
_R_LIST = [float(v) for v in _R_TABLE]  # plain Python floats -> inlined constants


def net_kernel(x_ref, o_ref):
    # --- traced_fn: y = abs(2 * x) ------------------------------------------
    v = x_ref[0] * jnp.float32(2.0)
    y = jnp.where(v < jnp.float32(0.0), -v, v)      # scalar abs

    # --- script_fn index: n = int(y), clamped (clamp in float, then cast) ----
    n = jnp.minimum(y, jnp.float32(12.0)).astype(jnp.int32)

    # --- folded TracedModule + ScriptModule: table lookup, inlined as a
    # compile-time scalar compare+select chain (no table operand, no gather) --
    r = jnp.float32(_R_LIST[12])
    for i in range(11, -1, -1):
        r = jnp.where(n == jnp.int32(i), jnp.float32(_R_LIST[i]), r)

    o_ref[0] = r


@jax.jit
def net_forward(x):
    """x: scalar float32 -> shape (1,) float32, matching Net.forward."""
    x1 = jnp.reshape(x, (1,)).astype(jnp.float32)
    out = pl.pallas_call(
        net_kernel,
        out_shape=jax.ShapeDtypeStruct((1,), jnp.float32),
        in_specs=[pl.BlockSpec(memory_space=pltpu.MemorySpace.SMEM)],   # x (1,)
        out_specs=pl.BlockSpec(memory_space=pltpu.MemorySpace.SMEM),
    )(x1)
    return out


def _reference(xv: float) -> float:
    # pure-Python mirror of the torch pipeline, for a sanity check
    y = abs(2.0 * xv)
    n = int(y)
    z = 1
    for i in range(n):
        z = z * (i + 1)
    w = math.floor(math.sqrt(np.float32(z)) / np.float32(5.0))
    if int(math.fmod(w, 2.0)) == 0:
        return w / 2.0
    return -w


if __name__ == "__main__":
    key = jax.random.PRNGKey(0)
    # scalar input, consistent with torch.rand(()) tracing (kept inside the
    # n <= 12 domain where the kernel matches torch exactly)
    x = jax.random.uniform(key, (), dtype=jnp.float32, minval=0.0, maxval=5.0)

    out = net_forward(x)
    jax.block_until_ready(out)

    ref = _reference(float(x))
    assert out.shape == (1,), out.shape
    assert out.dtype == jnp.float32, out.dtype
    assert abs(float(out[0]) - ref) < 1e-5, (float(out[0]), ref)

    # a couple of extra deterministic points across the valid domain
    for xv in [0.0, 1.0, -2.5, 3.7, 5.9, -6.0]:
        o = net_forward(jnp.float32(xv))
        jax.block_until_ready(o)
        assert abs(float(o[0]) - _reference(xv)) < 1e-5, (xv, float(o[0]), _reference(xv))

    print("KERNEL_OK")
</pallas_src>

<mosaic_0001>
module attributes {stable_mosaic.version = 11 : i64} {
  func.func @net_kernel(%arg0: memref<1xf32, #tpu.memory_space<smem>>, %arg1: memref<1xf32, #tpu.memory_space<smem>>) attributes {dimension_semantics = [], scalar_prefetch = 0 : i64, scratch_operands = 0 : i64, tpu.core_type = #tpu.core_type<tc>} {
    %c0 = arith.constant 0 : index
    %0 = memref.load %arg0[%c0] : memref<1xf32, #tpu.memory_space<smem>>
    %cst = arith.constant 2.000000e+00 : f32
    %1 = arith.mulf %0, %cst : f32
    %cst_0 = arith.constant 0.000000e+00 : f32
    %2 = arith.cmpf olt, %1, %cst_0 : f32
    %cst_1 = arith.constant 0.000000e+00 : f32
    %3 = arith.subf %cst_1, %1 : f32
    %4 = arith.select %2, %3, %1 : f32
    %cst_2 = arith.constant 1.200000e+01 : f32
    %5 = arith.minimumf %4, %cst_2 : f32
    %6 = arith.fptosi %5 : f32 to i32
    %c11_i32 = arith.constant 11 : i32
    %7 = arith.cmpi eq, %6, %c11_i32 : i32
    %cst_3 = arith.constant -1.263000e+03 : f32
    %cst_4 = arith.constant -4.377000e+03 : f32
    %8 = arith.select %7, %cst_3, %cst_4 : f32
    %c10_i32 = arith.constant 10 : i32
    %9 = arith.cmpi eq, %6, %c10_i32 : i32
    %cst_5 = arith.constant 1.900000e+02 : f32
    %10 = arith.select %9, %cst_5, %8 : f32
    %c9_i32 = arith.constant 9 : i32
    %11 = arith.cmpi eq, %6, %c9_i32 : i32
    %cst_6 = arith.constant 6.000000e+01 : f32
    %12 = arith.select %11, %cst_6, %10 : f32
    %c8_i32 = arith.constant 8 : i32
    %13 = arith.cmpi eq, %6, %c8_i32 : i32
    %cst_7 = arith.constant 2.000000e+01 : f32
    %14 = arith.select %13, %cst_7, %12 : f32
    %c7_i32 = arith.constant 7 : i32
    %15 = arith.cmpi eq, %6, %c7_i32 : i32
    %cst_8 = arith.constant 7.000000e+00 : f32
    %16 = arith.select %15, %cst_8, %14 : f32
    %c6_i32 = arith.constant 6 : i32
    %17 = arith.cmpi eq, %6, %c6_i32 : i32
    %cst_9 = arith.constant -5.000000e+00 : f32
    %18 = arith.select %17, %cst_9, %16 : f32
    %c5_i32 = arith.constant 5 : i32
    %19 = arith.cmpi eq, %6, %c5_i32 : i32
    %cst_10 = arith.constant 1.000000e+00 : f32
    %20 = arith.select %19, %cst_10, %18 : f32
    %c4_i32 = arith.constant 4 : i32
    %21 = arith.cmpi eq, %6, %c4_i32 : i32
    %cst_11 = arith.constant 0.000000e+00 : f32
    %22 = arith.select %21, %cst_11, %20 : f32
    %c3_i32 = arith.constant 3 : i32
    %23 = arith.cmpi eq, %6, %c3_i32 : i32
    %cst_12 = arith.constant 0.000000e+00 : f32
    %24 = arith.select %23, %cst_12, %22 : f32
    %c2_i32 = arith.constant 2 : i32
    %25 = arith.cmpi eq, %6, %c2_i32 : i32
    %cst_13 = arith.constant 0.000000e+00 : f32
    %26 = arith.select %25, %cst_13, %24 : f32
    %c1_i32 = arith.constant 1 : i32
    %27 = arith.cmpi eq, %6, %c1_i32 : i32
    %cst_14 = arith.constant 0.000000e+00 : f32
    %28 = arith.select %27, %cst_14, %26 : f32
    %c0_i32 = arith.constant 0 : i32
    %29 = arith.cmpi eq, %6, %c0_i32 : i32
    %cst_15 = arith.constant 0.000000e+00 : f32
    %30 = arith.select %29, %cst_15, %28 : f32
    %c0_16 = arith.constant 0 : index
    %31 = memref.load %arg1[%c0_16] : memref<1xf32, #tpu.memory_space<smem>>
    memref.store %30, %arg1[%c0_16] : memref<1xf32, #tpu.memory_space<smem>>
    return
  }
}

</mosaic_0001>

<llo_original>
// kernel: net_forward.1
$region0: #{net_forward.1}
  #allocation0 [shape = 'u32[]', space=smem, size = 0x4, offset = 0x4, fixed_abs, tag = 'smem constant byte address 0x4 - core index']
  #allocation1 [shape = 'u32[72,128]{1,0:T(1,128)}', space=vmem, size = 0x9000, scoped, tag = 'internal scratch']
  #allocation2 [shape = 'f32[1]{0:T(128)S(6)}', space=smem, size = 0x200, scoped, tag = 'scoped memory for net_forward.1']
  %s0 = inlined_call_operand.<no memory space> [shape: f32[1], index: 0, kind: input, shape index: {}]
  %s1 = inlined_call_operand.hbm [shape: f32[1], index: 1, kind: output, shape index: {}]
  %s2 = sld [smem:[#allocation0]]
  $region14: #{net_forward.1} parent=0
    _
  %s4 = ssub.s32 1, %s2
  %s5 = scalar_select 0, %s4, %s2
  %6 = sst [smem:[#allocation2]] %s0
  $region1: #{net_forward.1} parent=0
    #allocation3 [shape = 'u8[512]{0}', space=smem, size = 0x200, scoped, tag = 'output window, operand 0, single buffered']
    #allocation4 [shape = 's32[1]{0}', space=sflag, size = 0x4, scoped, tag = 'scoped memory for net_forward.1']
    %7 = vsyncpa [#allocation4], 0
    // Predicated region
    $region2: #{net_forward.1} parent=1 // pred_check
      _
    $region3: #{net_forward.1} parent=1 // pred_check_branch
      %9 = sbr.rel (0) target = $region5
    $region4: #{net_forward.1} parent=1 // pred_region
      _
    $region5: #{net_forward.1} parent=1 // pred_fallthru
      _
    %s10 = sld [smem:[#allocation2]]
    %s11 = smul.f32 %s10, 2.0
    %p12 = scmp.lt.f32.partialorder %s11, 0.0
    %s13 = ssub.f32 0.0, %s11
    %s14 = scalar_select %p12, %s13, %s11
    %s15 = smin.f32 %s14, 12.0
    %s16 = scvt.f32.s32.to.zero.pseudo %s15
    %p17 = scmp.eq.s32.totalorder %s16, 11
    %s18 = scalar_select %p17, -1263.0, -4377.0
    %p19 = scmp.eq.s32.totalorder %s16, 10
    %s20 = scalar_select %p19, 190.0, %s18
    %p21 = scmp.eq.s32.totalorder %s16, 9
    %s22 = scalar_select %p21, 60.0, %s20
    %p23 = scmp.eq.s32.totalorder %s16, 8
    %s24 = scalar_select %p23, 20.0, %s22
    %p25 = scmp.eq.s32.totalorder %s16, 7
    %s26 = scalar_select %p25, 7.0, %s24
    %p27 = scmp.eq.s32.totalorder %s16, 6
    %s28 = scalar_select %p27, -5.0, %s26
    %p29 = scmp.eq.s32.totalorder %s16, 5
    %s30 = scalar_select %p29, 1.0, %s28
    %p31 = scmp.eq.s32.totalorder %s16, 4
    %s32 = scalar_select %p31, 0.0, %s30
    %p33 = scmp.eq.s32.totalorder %s16, 3
    %s34 = scalar_select %p33, 0.0, %s32
    %p35 = scmp.eq.s32.totalorder %s16, 2
    %s36 = scalar_select %p35, 0.0, %s34
    %p37 = scmp.eq.s32.totalorder %s16, 1
    %s38 = scalar_select %p37, 0.0, %s36
    %p39 = scmp.eq.s32.totalorder %s16, 0
    %s40 = scalar_select %p39, 0.0, %s38
    %s41 = scalar_lea.smem [#allocation3], 0
    %42 = sst [smem:[%s41]] %s40
    // Predicated region
    $region6: #{net_forward.1} parent=1 // pred_check
      _
    $region7: #{net_forward.1} parent=1 // pred_check_branch
      %44 = sbr.rel (0) target = $region9
    $region8: #{net_forward.1} parent=1 // pred_region
      %46 = vsyncadd [#allocation4], 0
      %s48 = sshll.u32 %s1, 4
      %s49 = int_to_ptr.hbm [resolvable:$true] %s48
      %51 = dma.smem_to_hbm [#allocation3], 16, %s49, [#allocation4]
    $region9: #{net_forward.1} parent=1 // pred_fallthru
      _
    // Predicated region
    $region10: #{net_forward.1} parent=1 // pred_check
      _
    $region11: #{net_forward.1} parent=1 // pred_check_branch
      %53 = sbr.rel (0) target = $region13
    $region12: #{net_forward.1} parent=1 // pred_region
      %55 = dma.done [#allocation4], 16
    $region13: #{net_forward.1} parent=1 // pred_fallthru
      _
    %56 = sfence
    %57 = vsyncpa [#allocation4], 1

</llo_original>
